<compile_context>
chip_gen: v6e
topology: v6e:2x2x1
jax: 0.10.0
libtpu: 0.0.40
codegen_flags: <defaults>
</compile_context>

<pallas_src>
import functools

import jax
import jax.numpy as jnp
from jax.experimental import pallas as pl
from jax.experimental.pallas import tpu as pltpu


# ---------------------------------------------------------------------------
# Kernel: one (tm, tn) output tile of  out = (x @ A) @ B_t + bias
#   x_ref:    (tm, input_p)       a_ref:    (input_p, rank_p)
#   b_ref:    (rank_p, tn)        bias_ref: (1, tn)
#   o_ref:    (tm, tn)            xa_ref:   (tm, rank_p) f32 scratch
# ---------------------------------------------------------------------------
def _lowrank_kernel(x_ref, a_ref, b_ref, bias_ref, o_ref, xa_ref):
    # xa computed once per batch tile (output axis j is innermost) and reused
    # for every output tile of that batch tile.
    @pl.when(pl.program_id(1) == 0)
    def _():
        xa_ref[...] = jnp.dot(x_ref[...], a_ref[...],
                              preferred_element_type=jnp.float32)

    # Cast f32-accumulated intermediate to the weight dtype (no-op for f32;
    # restores single-pass bf16 MXU throughput when use_bf16=True).
    xa = xa_ref[...].astype(b_ref.dtype)
    out = jnp.dot(xa, b_ref[...], preferred_element_type=jnp.float32)
    o_ref[...] = (out + bias_ref[...]).astype(o_ref.dtype)


# ---------------------------------------------------------------------------
# Wrapper helpers
# ---------------------------------------------------------------------------
def _round_up(x, m):
    return ((x + m - 1) // m) * m


def _pad_to(arr, shape):
    pads = [(0, t - s) for s, t in zip(arr.shape, shape)]
    if all(p == (0, 0) for p in pads):
        return arr
    return jnp.pad(arr, pads)


def _vmem_capacity_bytes():
    try:
        return int(pltpu.get_tpu_info().vmem_capacity_bytes)
    except Exception:
        return 64 * 1024 * 1024  # conservative (v7x per-TC VMEM)


def _vmem_estimate(tm, tn, input_p, rank_p, itemsize, out_itemsize):
    # Double-buffered x / A / B tiles, bias + out tiles, plus f32 xa scratch.
    return (2 * itemsize * (tm * input_p + input_p * rank_p + rank_p * tn)
            + 2 * 4 * tn
            + 2 * out_itemsize * tm * tn
            + 4 * tm * rank_p)


def _choose_tiles(batch, output_size, input_p, rank_p, itemsize, out_itemsize,
                  tm_max, tn_max, vmem_budget):
    batch_8 = _round_up(batch, 8)
    out_128 = _round_up(output_size, 128)

    # Output tile: widest lane-dense tile with <= ~12.5% extra padding.
    tn = 128
    for cand in sorted({min(c, tn_max) for c in (512, 384, 256, 128)},
                       reverse=True):
        if cand % 128 != 0 or cand > out_128:
            continue
        if _round_up(out_128, cand) - out_128 <= out_128 // 8:
            tn = cand
            break
    tn = min(tn, out_128)
    out_p = _round_up(out_128, tn)

    # Batch tile: largest with <= ~12.5% extra padding that fits VMEM budget.
    tm = 8
    for cand in sorted({min(c, tm_max) for c in (512, 384, 256, 128,
                                                 64, 32, 16, 8)},
                       reverse=True):
        if cand % 8 != 0 or cand > batch_8:
            continue
        if _round_up(batch_8, cand) - batch_8 > batch_8 // 8:
            continue
        if _vmem_estimate(cand, tn, input_p, rank_p, itemsize,
                          out_itemsize) <= vmem_budget:
            tm = cand
            break
    batch_p = _round_up(batch_8, tm)
    return tm, tn, batch_p, out_p


# ---------------------------------------------------------------------------
# Forward pass
# ---------------------------------------------------------------------------
@functools.partial(
    jax.jit,
    static_argnames=("dlrt_step", "tm_max", "tn_max", "use_bf16", "out_dtype"))
def psi_backward_lowrank_forward(x, params, dlrt_step,
                                 tm_max=512, tn_max=512,
                                 use_bf16=False, out_dtype=jnp.float32):
    """Pallas implementation of PSI_Backward_LowRankLayer.forward."""
    batch, input_size = x.shape
    output_size, rank = params["V"].shape

    if dlrt_step == "K":
        a_mat, b_mat = params["K"], params["V"]
    elif dlrt_step == "L":
        a_mat, b_mat = params["U"], params["L"]
    elif dlrt_step == "test":
        # Fold S into V once per call: ((x @ U) @ S) @ V.T == (x @ U) @ (V @ S.T).T
        a_mat = params["U"]
        b_mat = jnp.dot(params["V"], params["S"].T)
    else:
        raise ValueError(f"unknown dlrt_step: {dlrt_step}")

    in_dtype = jnp.bfloat16 if use_bf16 else jnp.float32
    itemsize = jnp.dtype(in_dtype).itemsize
    out_itemsize = jnp.dtype(out_dtype).itemsize

    # Lane-aligned padded extents.
    input_p = _round_up(input_size, 128)
    rank_p = _round_up(rank, 128)

    vmem_budget = int(0.75 * _vmem_capacity_bytes())
    tm, tn, batch_p, out_p = _choose_tiles(
        batch, output_size, input_p, rank_p, itemsize, out_itemsize,
        tm_max, tn_max, vmem_budget)

    x_p = _pad_to(x.astype(in_dtype), (batch_p, input_p))
    a_p = _pad_to(a_mat.astype(in_dtype), (input_p, rank_p))
    # Pre-transpose B once (amortized over the whole grid): (rank_p, out_p).
    b_p = _pad_to(b_mat.T.astype(in_dtype), (rank_p, out_p))
    bias_p = _pad_to(
        params["bias"].astype(jnp.float32).reshape(1, output_size), (1, out_p))

    grid = (batch_p // tm, out_p // tn)

    # Advisory cost estimate (accurate now that xa is computed once per tile).
    flops = 2 * batch_p * input_p * rank_p + 2 * batch_p * rank_p * out_p
    bytes_accessed = (itemsize * (batch_p * input_p + input_p * rank_p
                                  + rank_p * out_p)
                      + 4 * out_p + out_itemsize * batch_p * out_p)

    vmem_est = _vmem_estimate(tm, tn, input_p, rank_p, itemsize, out_itemsize)
    vmem_limit = int(min(vmem_budget, max(32 * 1024 * 1024, 2 * vmem_est)))

    out_padded = pl.pallas_call(
        _lowrank_kernel,
        out_shape=jax.ShapeDtypeStruct((batch_p, out_p), out_dtype),
        grid_spec=pltpu.PrefetchScalarGridSpec(
            num_scalar_prefetch=0,
            grid=grid,
            in_specs=[
                # x: streams along batch axis; block index constant across j
                # so it is not re-fetched while output tiles iterate.
                pl.BlockSpec((tm, input_p), lambda i, j: (i, 0)),
                # A (K or U): fully resident, fetched once.
                pl.BlockSpec((input_p, rank_p), lambda i, j: (0, 0)),
                # B^T (rank_p, out_p): tiled along output only, canonical (K,N).
                pl.BlockSpec((rank_p, tn), lambda i, j: (0, j)),
                # bias: tiled along output only.
                pl.BlockSpec((1, tn), lambda i, j: (0, j)),
            ],
            out_specs=pl.BlockSpec((tm, tn), lambda i, j: (i, j)),
            scratch_shapes=[pltpu.VMEM((tm, rank_p), jnp.float32)],
        ),
        compiler_params=pltpu.CompilerParams(
            # Output axis carries the cached xa scratch across j -> arbitrary;
            # batch axis parallel (v7x megacore sharding).
            dimension_semantics=("parallel", "arbitrary"),
            vmem_limit_bytes=vmem_limit,
        ),
        cost_estimate=pl.CostEstimate(
            flops=flops, transcendentals=0, bytes_accessed=bytes_accessed),
    )(x_p, a_p, b_p, bias_p)

    return out_padded[:batch, :output_size]


# ---------------------------------------------------------------------------
# Deterministic parameter initialization (mirrors the module __init__).
# ---------------------------------------------------------------------------
def init_params(key, input_size, output_size, rank):
    ku, ks, kv, kb = jax.random.split(key, 4)
    U_raw = jax.random.normal(ku, (input_size, rank), dtype=jnp.float32)
    S = jax.random.normal(ks, (rank, rank), dtype=jnp.float32)
    V_raw = jax.random.normal(kv, (output_size, rank), dtype=jnp.float32)
    bias = jax.random.normal(kb, (output_size,), dtype=jnp.float32)

    U, _ = jnp.linalg.qr(U_raw, mode="reduced")
    V, _ = jnp.linalg.qr(V_raw, mode="reduced")
    K = U @ S
    L = V @ S.T
    return {"U": U, "S": S, "V": V, "K": K, "L": L, "bias": bias}


def _reference_forward(x, p, dlrt_step):
    if dlrt_step == "K":
        out = (x @ p["K"]) @ p["V"].T
    elif dlrt_step == "L":
        out = (x @ p["U"]) @ p["L"].T
    else:  # 'test'
        out = ((x @ p["U"]) @ p["S"]) @ p["V"].T
    return out + p["bias"]


if __name__ == "__main__":
    # Small shapes consistent with a fully-connected low-rank layer.
    batch, input_size, output_size, rank = 8, 32, 16, 8

    key = jax.random.PRNGKey(0)
    kx, kp = jax.random.split(key)
    x = jax.random.normal(kx, (batch, input_size), dtype=jnp.float32)
    params = init_params(kp, input_size, output_size, rank)

    ok = True
    for step in ("K", "L", "test"):
        out = jax.block_until_ready(
            psi_backward_lowrank_forward(x, params, step))
        ref = _reference_forward(x, params, step)
        if not jnp.allclose(out, ref, atol=1e-4, rtol=1e-4):
            ok = False
            print(f"MISMATCH for step {step}: max abs err = "
                  f"{float(jnp.max(jnp.abs(out - ref))):.3e}")

    if ok:
        print("KERNEL_OK")
</pallas_src>

<mosaic_0001>
module attributes {stable_mosaic.version = 11 : i64} {
  func.func @_lowrank_kernel(%arg0: i32, %arg1: i32, %arg2: memref<8x128xf32, #tpu.memory_space<vmem>>, %arg3: memref<128x128xf32, #tpu.memory_space<vmem>>, %arg4: memref<128x128xf32, #tpu.memory_space<vmem>>, %arg5: memref<1x128xf32, #tpu.memory_space<vmem>>, %arg6: memref<8x128xf32, #tpu.memory_space<vmem>>, %arg7: memref<8x128xf32, #tpu.memory_space<vmem>>) attributes {dimension_semantics = [#tpu.dimension_semantics<parallel>, #tpu.dimension_semantics<arbitrary>], iteration_bounds = array<i64: 1, 1>, scalar_prefetch = 0 : i64, scratch_operands = 1 : i64, tpu.core_type = #tpu.core_type<tc>, window_params = [{transform_indices = @transform_0, window_bounds = array<i64: 8, 128>}, {pipeline_mode = #tpu.pipeline_mode<synchronous>, transform_indices = @transform_1, window_bounds = array<i64: 128, 128>}, {transform_indices = @transform_2, window_bounds = array<i64: 128, 128>}, {transform_indices = @transform_3, window_bounds = array<i64: 1, 128>}, {transform_indices = @transform_4, window_bounds = array<i64: 8, 128>}]} {
    %c0_i32 = arith.constant 0 : i32
    %0 = arith.cmpi eq, %arg1, %c0_i32 : i32
    %1 = arith.extui %0 : i1 to i32
    %c0_i32_0 = arith.constant 0 : i32
    %2 = arith.cmpi ne, %1, %c0_i32_0 : i32
    scf.if %2 {
      %c0_8 = arith.constant 0 : index
      %c0_9 = arith.constant 0 : index
      %10 = vector.load %arg2[%c0_8, %c0_9] : memref<8x128xf32, #tpu.memory_space<vmem>>, vector<8x128xf32>
      %c0_10 = arith.constant 0 : index
      %c0_11 = arith.constant 0 : index
      %11 = vector.load %arg3[%c0_10, %c0_11] : memref<128x128xf32, #tpu.memory_space<vmem>>, vector<128x128xf32>
      %cst_12 = arith.constant dense<0.000000e+00> : vector<8x128xf32>
      %12 = tpu.matmul %10, %11, %cst_12 {dimension_numbers = #tpu.dot_dimension_numbers<[1], [0], [0], [1], [0, 0, 1, 1], [], []>} : vector<8x128xf32>, vector<128x128xf32>, vector<8x128xf32> -> vector<8x128xf32>
      %c0_13 = arith.constant 0 : index
      %c0_14 = arith.constant 0 : index
      %13 = vector.load %arg7[%c0_13, %c0_14] : memref<8x128xf32, #tpu.memory_space<vmem>>, vector<8x128xf32>
      tpu.vector_store %arg7[%c0_13, %c0_14], %12 {strides = array<i32>} : memref<8x128xf32, #tpu.memory_space<vmem>>, vector<8x128xf32>,
    } else {
    }
    %c0 = arith.constant 0 : index
    %c0_1 = arith.constant 0 : index
    %3 = vector.load %arg7[%c0, %c0_1] : memref<8x128xf32, #tpu.memory_space<vmem>>, vector<8x128xf32>
    %c0_2 = arith.constant 0 : index
    %c0_3 = arith.constant 0 : index
    %4 = vector.load %arg4[%c0_2, %c0_3] : memref<128x128xf32, #tpu.memory_space<vmem>>, vector<128x128xf32>
    %cst = arith.constant dense<0.000000e+00> : vector<8x128xf32>
    %5 = tpu.matmul %3, %4, %cst {dimension_numbers = #tpu.dot_dimension_numbers<[1], [0], [0], [1], [0, 0, 1, 1], [], []>} : vector<8x128xf32>, vector<128x128xf32>, vector<8x128xf32> -> vector<8x128xf32>
    %c0_4 = arith.constant 0 : index
    %c0_5 = arith.constant 0 : index
    %6 = vector.load %arg5[%c0_4, %c0_5] : memref<1x128xf32, #tpu.memory_space<vmem>>, vector<1x128xf32>
    %7 = vector.broadcast %6 : vector<1x128xf32> to vector<8x128xf32>
    %8 = arith.addf %5, %7 : vector<8x128xf32>
    %c0_6 = arith.constant 0 : index
    %c0_7 = arith.constant 0 : index
    %9 = vector.load %arg6[%c0_6, %c0_7] : memref<8x128xf32, #tpu.memory_space<vmem>>, vector<8x128xf32>
    tpu.vector_store %arg6[%c0_6, %c0_7], %8 {strides = array<i32>} : memref<8x128xf32, #tpu.memory_space<vmem>>, vector<8x128xf32>,
    return
  }
  func.func @transform_0(%arg0: i32, %arg1: i32) -> (i32, i32) {
    %c0_i32 = arith.constant 0 : i32
    %c0_i32_0 = arith.constant 0 : i32
    return %arg0, %c0_i32 : i32, i32
  }
  func.func @transform_1(%arg0: i32, %arg1: i32) -> (i32, i32) {
    %c0_i32 = arith.constant 0 : i32
    %c0_i32_0 = arith.constant 0 : i32
    %c0_i32_1 = arith.constant 0 : i32
    return %c0_i32, %c0_i32_0 : i32, i32
  }
  func.func @transform_2(%arg0: i32, %arg1: i32) -> (i32, i32) {
    %c0_i32 = arith.constant 0 : i32
    %c0_i32_0 = arith.constant 0 : i32
    return %c0_i32, %arg1 : i32, i32
  }
  func.func @transform_3(%arg0: i32, %arg1: i32) -> (i32, i32) {
    %c0_i32 = arith.constant 0 : i32
    %c0_i32_0 = arith.constant 0 : i32
    return %c0_i32, %arg1 : i32, i32
  }
  func.func @transform_4(%arg0: i32, %arg1: i32) -> (i32, i32) {
    %c0_i32 = arith.constant 0 : i32
    return %arg0, %arg1 : i32, i32
  }
}

</mosaic_0001>

<llo_original>
// kernel: psi_backward_lowrank_forward.1
$region0: #{psi_backward_lowrank_forward.1}
  #allocation0 [shape = 'u32[]', space=smem, size = 0x4, offset = 0x4, fixed_abs, tag = 'smem constant byte address 0x4 - core index']
  #allocation1 [shape = 'u32[144,128]{1,0:T(1,128)}', space=vmem, size = 0x12000, scoped, tag = 'internal scratch']
  #allocation2 [shape = 'f32[8,128]{1,0:T(8,128)}', space=vmem, size = 0x1000, scoped, tag = 'scratch operand']
  %s0 = inlined_call_operand.vmem [shape: f32[8,128], index: 0, kind: input, shape index: {}]
  %s1 = inlined_call_operand.vmem [shape: f32[128,128], index: 1, kind: input, shape index: {}]
  %s2 = inlined_call_operand.vmem [shape: f32[128,128], index: 2, kind: input, shape index: {}]
  %s3 = inlined_call_operand.vmem [shape: f32[1,128], index: 3, kind: input, shape index: {}]
  %s4 = inlined_call_operand.hbm [shape: f32[8,128], index: 4, kind: output, shape index: {}]
  %s5 = sld [smem:[#allocation0]]
  $region30: #{psi_backward_lowrank_forward.1} parent=0
    _
  %s7 = ssub.s32 1, %s5
  %s8 = scalar_select 0, %s7, %s5
  $region1: #{psi_backward_lowrank_forward.1} parent=0
    #allocation3 [shape = 'u8[4096]{0}', space=vmem, size = 0x1000, scoped, tag = 'output window, operand 0, single buffered']
    #allocation4 [shape = 's32[1]{0}', space=sflag, size = 0x4, scoped, tag = 'scoped memory for psi_backward_lowrank_forward.1']
    %9 = vsyncpa [#allocation4], 0
    // Predicated region
    $region2: #{psi_backward_lowrank_forward.1} parent=1 // pred_check
      _
    $region3: #{psi_backward_lowrank_forward.1} parent=1 // pred_check_branch
      %11 = sbr.rel (0) target = $region5
    $region4: #{psi_backward_lowrank_forward.1} parent=1 // pred_region
      _
    $region5: #{psi_backward_lowrank_forward.1} parent=1 // pred_fallthru
      _
    // Predicated region
    $region6: #{psi_backward_lowrank_forward.1} parent=1 // pred_check
      _
    $region7: #{psi_backward_lowrank_forward.1} parent=1 // pred_check_branch
      %13 = sbr.rel (0) target = $region9
    $region8: #{psi_backward_lowrank_forward.1} parent=1 // pred_region
      _
    $region9: #{psi_backward_lowrank_forward.1} parent=1 // pred_fallthru
      _
    // Predicated region
    $region10: #{psi_backward_lowrank_forward.1} parent=1 // pred_check
      _
    $region11: #{psi_backward_lowrank_forward.1} parent=1 // pred_check_branch
      %15 = sbr.rel (0) target = $region13
    $region12: #{psi_backward_lowrank_forward.1} parent=1 // pred_region
      _
    $region13: #{psi_backward_lowrank_forward.1} parent=1 // pred_fallthru
      _
    // Predicated region
    $region14: #{psi_backward_lowrank_forward.1} parent=1 // pred_check
      _
    $region15: #{psi_backward_lowrank_forward.1} parent=1 // pred_check_branch
      %17 = sbr.rel (0) target = $region17
    $region16: #{psi_backward_lowrank_forward.1} parent=1 // pred_region
      _
    $region17: #{psi_backward_lowrank_forward.1} parent=1 // pred_fallthru
      _
    %p18 = scmp.eq.s32.totalorder 0, 0
    // Predicated region
    $region18: #{psi_backward_lowrank_forward.1} parent=1 // pred_check
      %p19 = pneg %p18
    $region19: #{psi_backward_lowrank_forward.1} parent=1 // pred_check_branch
      %21 = sbr.rel (%p19) target = $region21
    $region20: #{psi_backward_lowrank_forward.1} parent=1 // pred_region
      %v22 = vld [vmem:[%s0] sm:$0xff]
      %v23 = vld [vmem:[%s1] sm:$0xff]
      %v24 = vld [vmem:[%s1 + $0x8] sm:$0xff]
      %v25 = vld [vmem:[%s1 + $0x10] sm:$0xff]
      %v26 = vld [vmem:[%s1 + $0x18] sm:$0xff]
      %v27 = vld [vmem:[%s1 + $0x20] sm:$0xff]
      %v28 = vld [vmem:[%s1 + $0x28] sm:$0xff]
      %v29 = vld [vmem:[%s1 + $0x30] sm:$0xff]
      %v30 = vld [vmem:[%s1 + $0x38] sm:$0xff]
      %v31 = vld [vmem:[%s1 + $0x40] sm:$0xff]
      %v32 = vld [vmem:[%s1 + $0x48] sm:$0xff]
      %v33 = vld [vmem:[%s1 + $0x50] sm:$0xff]
      %v34 = vld [vmem:[%s1 + $0x58] sm:$0xff]
      %v35 = vld [vmem:[%s1 + $0x60] sm:$0xff]
      %v36 = vld [vmem:[%s1 + $0x68] sm:$0xff]
      %v37 = vld [vmem:[%s1 + $0x70] sm:$0xff]
      %v38 = vld [vmem:[%s1 + $0x78] sm:$0xff]
      %39 = vmatprep.subr.mxu0 0.0
      %40 = vmatpush1.msra.mxu0 %v38
      %41 = vmatprep.subr.mxu0 0.0
      %42 = vmatpush1.msra.mxu0 %v37
      %43 = vmatprep.subr.mxu0 0.0
      %44 = vmatpush1.msra.mxu0 %v36
      %45 = vmatprep.subr.mxu0 0.0
      %46 = vmatpush1.msra.mxu0 %v35
      %47 = vmatprep.subr.mxu0 0.0
      %48 = vmatpush1.msra.mxu0 %v34
      %49 = vmatprep.subr.mxu0 0.0
      %50 = vmatpush1.msra.mxu0 %v33
      %51 = vmatprep.subr.mxu0 0.0
      %52 = vmatpush1.msra.mxu0 %v32
      %53 = vmatprep.subr.mxu0 0.0
      %54 = vmatpush1.msra.mxu0 %v31
      %55 = vmatprep.subr.mxu0 0.0
      %56 = vmatpush1.msra.mxu0 %v30
      %57 = vmatprep.subr.mxu0 0.0
      %58 = vmatpush1.msra.mxu0 %v29
      %59 = vmatprep.subr.mxu0 0.0
      %60 = vmatpush1.msra.mxu0 %v28
      %61 = vmatprep.subr.mxu0 0.0
      %62 = vmatpush1.msra.mxu0 %v27
      %63 = vmatprep.subr.mxu0 0.0
      %64 = vmatpush1.msra.mxu0 %v26
      %65 = vmatprep.subr.mxu0 0.0
      %66 = vmatpush1.msra.mxu0 %v25
      %67 = vmatprep.subr.mxu0 0.0
      %68 = vmatpush1.msra.mxu0 %v24
      %69 = vmatprep.subr.mxu0 0.0
      %70 = vmatpush1.msra.mxu0 %v23
      %71 = vmatprep.subr.mxu0 0.0
      %72 = vmatpush2.msra.mxu0 0.0
      %73 = vmatprep.subr.mxu0 0.0
      %74 = vmatpush2.msra.mxu0 0.0
      %75 = vmatprep.subr.mxu0 0.0
      %76 = vmatpush2.msra.mxu0 0.0
      %77 = vmatprep.subr.mxu0 0.0
      %78 = vmatpush2.msra.mxu0 0.0
      %79 = vmatprep.subr.mxu0 0.0
      %80 = vmatpush2.msra.mxu0 0.0
      %81 = vmatprep.subr.mxu0 0.0
      %82 = vmatpush2.msra.mxu0 0.0
      %83 = vmatprep.subr.mxu0 0.0
      %84 = vmatpush2.msra.mxu0 0.0
      %85 = vmatprep.subr.mxu0 0.0
      %86 = vmatpush2.msra.mxu0 0.0
      %87 = vmatprep.subr.mxu0 0.0
      %88 = vmatpush2.msra.mxu0 0.0
      %89 = vmatprep.subr.mxu0 0.0
      %90 = vmatpush2.msra.mxu0 0.0
      %91 = vmatprep.subr.mxu0 0.0
      %92 = vmatpush2.msra.mxu0 0.0
      %93 = vmatprep.subr.mxu0 0.0
      %94 = vmatpush2.msra.mxu0 0.0
      %95 = vmatprep.subr.mxu0 0.0
      %96 = vmatpush2.msra.mxu0 0.0
      %97 = vmatprep.subr.mxu0 0.0
      %98 = vmatpush2.msra.mxu0 0.0
      %99 = vmatprep.subr.mxu0 0.0
      %100 = vmatpush2.msra.mxu0 0.0
      %101 = vmatprep.subr.mxu0 0.0
      %102 = vmatpush2.msra.mxu0 0.0
      %103 = vmatprep.mubr.f32.mxu0 0.0
      %104 = vmatmul.mubr.f32.gmra.mxu0 %v22
      %v105 = vpop.f32.mrf.mxu0
      %v106 = vadd.f32 0.0, %v105
      %v107 = vpop.f32.mrf.mxu0
      %108 = vdwg.mxu0
      %109 = vst [vmem:[#allocation2] sm:$0xff] %v106
    $region21: #{psi_backward_lowrank_forward.1} parent=1 // pred_fallthru
      _
    %v110 = vld [vmem:[#allocation2] sm:$0xff]
    %v111 = vld [vmem:[%s2] sm:$0xff]
    %v112 = vld [vmem:[%s2 + $0x8] sm:$0xff]
    %v113 = vld [vmem:[%s2 + $0x10] sm:$0xff]
    %v114 = vld [vmem:[%s2 + $0x18] sm:$0xff]
    %v115 = vld [vmem:[%s2 + $0x20] sm:$0xff]
    %v116 = vld [vmem:[%s2 + $0x28] sm:$0xff]
    %v117 = vld [vmem:[%s2 + $0x30] sm:$0xff]
    %v118 = vld [vmem:[%s2 + $0x38] sm:$0xff]
    %v119 = vld [vmem:[%s2 + $0x40] sm:$0xff]
    %v120 = vld [vmem:[%s2 + $0x48] sm:$0xff]
    %v121 = vld [vmem:[%s2 + $0x50] sm:$0xff]
    %v122 = vld [vmem:[%s2 + $0x58] sm:$0xff]
    %v123 = vld [vmem:[%s2 + $0x60] sm:$0xff]
    %v124 = vld [vmem:[%s2 + $0x68] sm:$0xff]
    %v125 = vld [vmem:[%s2 + $0x70] sm:$0xff]
    %v126 = vld [vmem:[%s2 + $0x78] sm:$0xff]
    %v127 = vld [vmem:[%s3] sm:$0x1]
    %v129 = vlaneseq
    %v130 = vshrl.u32 %v129, 7
    %v131 = vsub.s32 0, %v130
    %v132 = vrot.slane %v127, %v131
    %134 = vmatprep.subr.mxu0 0.0
    %135 = vmatpush1.msra.mxu0 %v126
    %136 = vmatprep.subr.mxu0 0.0
    %137 = vmatpush1.msra.mxu0 %v125
    %138 = vmatprep.subr.mxu0 0.0
    %139 = vmatpush1.msra.mxu0 %v124
    %140 = vmatprep.subr.mxu0 0.0
    %141 = vmatpush1.msra.mxu0 %v123
    %142 = vmatprep.subr.mxu0 0.0
    %143 = vmatpush1.msra.mxu0 %v122
    %144 = vmatprep.subr.mxu0 0.0
    %145 = vmatpush1.msra.mxu0 %v121
    %146 = vmatprep.subr.mxu0 0.0
    %147 = vmatpush1.msra.mxu0 %v120
    %148 = vmatprep.subr.mxu0 0.0
    %149 = vmatpush1.msra.mxu0 %v119
    %150 = vmatprep.subr.mxu0 0.0
    %151 = vmatpush1.msra.mxu0 %v118
    %152 = vmatprep.subr.mxu0 0.0
    %153 = vmatpush1.msra.mxu0 %v117
    %154 = vmatprep.subr.mxu0 0.0
    %155 = vmatpush1.msra.mxu0 %v116
    %156 = vmatprep.subr.mxu0 0.0
    %157 = vmatpush1.msra.mxu0 %v115
    %158 = vmatprep.subr.mxu0 0.0
    %159 = vmatpush1.msra.mxu0 %v114
    %160 = vmatprep.subr.mxu0 0.0
    %161 = vmatpush1.msra.mxu0 %v113
    %162 = vmatprep.subr.mxu0 0.0
    %163 = vmatpush1.msra.mxu0 %v112
    %164 = vmatprep.subr.mxu0 0.0
    %165 = vmatpush1.msra.mxu0 %v111
    %166 = vmatprep.subr.mxu0 0.0
    %167 = vmatpush2.msra.mxu0 0.0
    %168 = vmatprep.subr.mxu0 0.0
    %169 = vmatpush2.msra.mxu0 0.0
    %170 = vmatprep.subr.mxu0 0.0
    %171 = vmatpush2.msra.mxu0 0.0
    %172 = vmatprep.subr.mxu0 0.0
    %173 = vmatpush2.msra.mxu0 0.0
    %174 = vmatprep.subr.mxu0 0.0
    %175 = vmatpush2.msra.mxu0 0.0
    %176 = vmatprep.subr.mxu0 0.0
    %177 = vmatpush2.msra.mxu0 0.0
    %178 = vmatprep.subr.mxu0 0.0
    %179 = vmatpush2.msra.mxu0 0.0
    %180 = vmatprep.subr.mxu0 0.0
    %181 = vmatpush2.msra.mxu0 0.0
    %182 = vmatprep.subr.mxu0 0.0
    %183 = vmatpush2.msra.mxu0 0.0
    %184 = vmatprep.subr.mxu0 0.0
    %185 = vmatpush2.msra.mxu0 0.0
    %186 = vmatprep.subr.mxu0 0.0
    %187 = vmatpush2.msra.mxu0 0.0
    %188 = vmatprep.subr.mxu0 0.0
    %189 = vmatpush2.msra.mxu0 0.0
    %190 = vmatprep.subr.mxu0 0.0
    %191 = vmatpush2.msra.mxu0 0.0
    %192 = vmatprep.subr.mxu0 0.0
    %193 = vmatpush2.msra.mxu0 0.0
    %194 = vmatprep.subr.mxu0 0.0
    %195 = vmatpush2.msra.mxu0 0.0
    %196 = vmatprep.subr.mxu0 0.0
    %197 = vmatpush2.msra.mxu0 0.0
    %198 = vmatprep.mubr.f32.mxu0 0.0
    %199 = vmatmul.mubr.f32.gmra.mxu0 %v110
    %v200 = vpop.f32.mrf.mxu0
    %v201 = vadd.f32 %v132, %v200
    %v202 = vpop.f32.mrf.mxu0
    %203 = vdwg.mxu0
    %204 = vst [vmem:[#allocation3] sm:$0xff] %v201
    // Predicated region
    $region22: #{psi_backward_lowrank_forward.1} parent=1 // pred_check
      _
    $region23: #{psi_backward_lowrank_forward.1} parent=1 // pred_check_branch
      %206 = sbr.rel (0) target = $region25
    $region24: #{psi_backward_lowrank_forward.1} parent=1 // pred_region
      %s208 = ssub.s32 128, 128
      %209 = vsyncadd [#allocation4], %s208
      %s211 = sshll.u32 [#allocation3], 4
      %s212 = int_to_ptr.vmem [resolvable:$true] %s211
      %214 = dma.vmem_to_hbm [thread:$0]  %s212, 128, %s4, [#allocation4]
    $region25: #{psi_backward_lowrank_forward.1} parent=1 // pred_fallthru
      _
    // Predicated region
    $region26: #{psi_backward_lowrank_forward.1} parent=1 // pred_check
      _
    $region27: #{psi_backward_lowrank_forward.1} parent=1 // pred_check_branch
      %216 = sbr.rel (0) target = $region29
    $region28: #{psi_backward_lowrank_forward.1} parent=1 // pred_region
      %217 = dma.done [#allocation4], 128
    $region29: #{psi_backward_lowrank_forward.1} parent=1 // pred_fallthru
      _
    %218 = vsyncpa [#allocation4], 1

</llo_original>
